<compile_context>
chip_gen: v6e
topology: v6e:2x2x1
jax: 0.10.0
libtpu: 0.0.40
codegen_flags: <defaults>
</compile_context>

<pallas_src>
import functools

import jax
import jax.numpy as jnp
from jax.experimental import pallas as pl
from jax.experimental.pallas import tpu as pltpu


def _round_up(n, m):
    return ((n + m - 1) // m) * m


def _vmem_capacity_bytes():
    try:
        return int(pltpu.get_tpu_info().vmem_capacity_bytes)
    except Exception:
        return 64 * 1024 * 1024  # conservative fallback (v7x per-TC VMEM)


def _mlp_kernel(x_ref, w1_ref, b1_ref, w2_ref, b2_ref, w3_ref, b3_ref, o_ref,
                *, compute_dtype, precision):
    # x is DMA'd at its native dtype; the cast to the MXU input dtype happens on
    # the VPU here (hidden under the MXU work), not as a separate XLA op in HBM.
    x = x_ref[...].astype(compute_dtype)
    h = jnp.dot(x, w1_ref[...], precision=precision,
                preferred_element_type=jnp.float32) + b1_ref[...]
    h = jnp.maximum(h, 0.0).astype(compute_dtype)
    h = jnp.dot(h, w2_ref[...], precision=precision,
                preferred_element_type=jnp.float32) + b2_ref[...]
    h = jnp.maximum(h, 0.0).astype(compute_dtype)
    y = jnp.dot(h, w3_ref[...], precision=precision,
                preferred_element_type=jnp.float32) + b3_ref[...]
    o_ref[...] = y.astype(o_ref.dtype)


@functools.partial(jax.jit,
                   static_argnames=("batch_tile", "compute_dtype", "pad_out_lanes"))
def mlp_forward(x, params, *, batch_tile=2048, compute_dtype=jnp.bfloat16,
                pad_out_lanes=False):
    """Fused MLP forward.

    x:      (B, input_dim) float32
    params: dict with w1 (in,h1), b1 (1,h1), w2 (h1,h2), b2 (1,h2),
            w3 (h2,out), b3 (1,out)   (weights stored as PyTorch weight.T)
    batch_tile:    rows per grid step for large batches (sweep 1024..4096);
                   clamped to the per-generation VMEM budget automatically.
    compute_dtype: MXU-input dtype (default bf16 on all generations); the
                   accumulation and bias/ReLU epilogue always stay float32.
                   compute_dtype=jnp.float32 uses precision=HIGHEST.
    pad_out_lanes: pad the final projection to a 128-lane multiple (unmasked
                   vst) instead of a masked narrow store; off by default.
    """
    w1, b1 = params["w1"], params["b1"]
    w2, b2 = params["w2"], params["b2"]
    w3, b3 = params["w3"], params["b3"]
    b1, b2, b3 = (b.reshape(1, -1) for b in (b1, b2, b3))

    B, in_dim = x.shape
    h1 = w1.shape[1]
    h2 = w2.shape[1]
    out_dim = w3.shape[1]
    out_dtype = x.dtype

    cdt = jnp.dtype(compute_dtype)
    c_item = cdt.itemsize
    out_item = jnp.dtype(out_dtype).itemsize
    row_align = 8  # x / output stay f32 in HBM -> sublane granule is 8

    # --- Optional lane-dense output (benchmark variant) -----------------------
    out_eff = out_dim
    if pad_out_lanes:
        out_eff = _round_up(max(out_dim, 128), 128)
        if out_eff != out_dim:
            w3 = jnp.pad(w3, ((0, 0), (0, out_eff - out_dim)))
            b3 = jnp.pad(b3, ((0, 0), (0, out_eff - out_dim)))

    # --- Per-generation VMEM budget and tile clamp -----------------------------
    vmem_cap = _vmem_capacity_bytes()
    vmem_budget = (vmem_cap * 3) // 4          # ~48 MiB on v7x, ~96 MiB on v5e/v6e
    weight_vmem = ((w1.size + w2.size + w3.size) * c_item
                   + (b1.size + b2.size + b3.size) * 4)
    per_row = (2 * in_dim * jnp.dtype(x.dtype).itemsize   # x tile, double-buffered
               + 2 * out_eff * out_item                    # out tile, double-buffered
               + (h1 + h2) * 4                             # f32 intermediates
               + (in_dim + h1 + h2) * c_item)              # compute-dtype MXU inputs
    margin = 2 * 1024 * 1024                                # Mosaic internal scratch
    max_tile = max((vmem_budget - 2 * weight_vmem - margin) // per_row, row_align)
    max_tile = max((max_tile // row_align) * row_align, row_align)

    # --- Batch tiling ----------------------------------------------------------
    tile = min(_round_up(batch_tile, row_align), max_tile)
    if B <= tile:
        if B >= 4 * row_align:
            # Medium batch: force >=2 grid steps so v7x's two TensorCores share it.
            tile = min(_round_up(pl.cdiv(B, 2), row_align), max_tile)
        else:
            tile = B            # tiny batch: one full block, zero pipeline overhead
    grid = (pl.cdiv(B, tile),)  # ragged tail handled by Pallas partial blocks

    # --- Operands (weights cast once; x cast in-kernel; biases f32) ------------
    w1k, w2k, w3k = (w.astype(cdt) for w in (w1, w2, w3))
    b1f, b2f, b3f = (b.astype(jnp.float32) for b in (b1, b2, b3))
    precision = (jax.lax.Precision.HIGHEST
                 if cdt == jnp.dtype(jnp.float32) else None)
    kernel = functools.partial(_mlp_kernel, compute_dtype=cdt, precision=precision)

    in_specs = [
        pl.BlockSpec((tile, in_dim), lambda i: (i, 0)),   # x tile
        pl.BlockSpec((in_dim, h1), lambda i: (0, 0)),     # w1 (resident, fetched once)
        pl.BlockSpec((1, h1), lambda i: (0, 0)),          # b1
        pl.BlockSpec((h1, h2), lambda i: (0, 0)),         # w2
        pl.BlockSpec((1, h2), lambda i: (0, 0)),          # b2
        pl.BlockSpec((h2, out_eff), lambda i: (0, 0)),    # w3
        pl.BlockSpec((1, out_eff), lambda i: (0, 0)),     # b3
    ]
    out_specs = pl.BlockSpec((tile, out_eff), lambda i: (i, 0))

    # --- Scheduler hint + VMEM limit -------------------------------------------
    flops = 2 * B * (in_dim * h1 + h1 * h2 + h2 * out_eff)
    bytes_accessed = (x.size * x.dtype.itemsize
                      + sum(a.size * a.dtype.itemsize
                            for a in (w1k, w2k, w3k, b1f, b2f, b3f))
                      + B * out_eff * out_item)
    cost = pl.CostEstimate(flops=int(flops), transcendentals=0,
                           bytes_accessed=int(bytes_accessed))

    vmem_est = 2 * weight_vmem + tile * per_row + margin
    vmem_limit = int(min(vmem_budget, max(int(1.25 * vmem_est), 16 * 1024 * 1024)))

    y = pl.pallas_call(
        kernel,
        out_shape=jax.ShapeDtypeStruct((B, out_eff), out_dtype),
        grid_spec=pltpu.PrefetchScalarGridSpec(
            num_scalar_prefetch=0,
            grid=grid,
            in_specs=in_specs,
            out_specs=out_specs,
        ),
        compiler_params=pltpu.CompilerParams(
            dimension_semantics=("parallel",),
            vmem_limit_bytes=vmem_limit,
        ),
        cost_estimate=cost,
    )(x, w1k, b1f, w2k, b2f, w3k, b3f)

    return y[:, :out_dim] if out_eff != out_dim else y


def init_mlp_params(key, input_dim, output_dim, hidden_sizes=(256, 256)):
    """Deterministic init matching nn.Linear's default U(-1/sqrt(fan_in), +...)."""
    dims = [input_dim, *hidden_sizes, output_dim]
    params = {}
    for idx in range(len(dims) - 1):
        fan_in, fan_out = dims[idx], dims[idx + 1]
        key, kw, kb = jax.random.split(key, 3)
        bound = 1.0 / jnp.sqrt(fan_in)
        # stored as (fan_in, fan_out) == PyTorch weight.T
        params[f"w{idx + 1}"] = jax.random.uniform(
            kw, (fan_in, fan_out), jnp.float32, -bound, bound)
        params[f"b{idx + 1}"] = jax.random.uniform(
            kb, (1, fan_out), jnp.float32, -bound, bound)
    return params


def mlp_reference(x, params):
    """Pure-JAX reference for correctness checking."""
    h = jnp.maximum(x @ params["w1"] + params["b1"], 0.0)
    h = jnp.maximum(h @ params["w2"] + params["b2"], 0.0)
    return h @ params["w3"] + params["b3"]


if __name__ == "__main__":
    key = jax.random.PRNGKey(0)

    input_dim = 32     # e.g. observation dim in MADDPG
    output_dim = 16    # e.g. action dim / Q-value head width
    hidden_sizes = (256, 256)

    key, kp = jax.random.split(key)
    params = init_mlp_params(kp, input_dim, output_dim, hidden_sizes)

    # 1) Tiny batch: single block, grid=(1,), default bf16 MXU inputs.
    key, kx = jax.random.split(key)
    x_small = jax.random.normal(kx, (8, input_dim), jnp.float32)
    y_small = jax.block_until_ready(mlp_forward(x_small, params))
    assert y_small.shape == (8, output_dim)
    assert jnp.allclose(y_small, mlp_reference(x_small, params), atol=5e-2, rtol=5e-2)

    # 2) Tiled + ragged batch (300 rows, 128-row tiles -> 3 steps, partial tail
    #    handled in-kernel via Pallas partial blocks; no wrapper-side jnp.pad).
    key, kx = jax.random.split(key)
    x_big = jax.random.normal(kx, (300, input_dim), jnp.float32)
    y_big = jax.block_until_ready(mlp_forward(x_big, params, batch_tile=128))
    assert y_big.shape == (300, output_dim)
    assert jnp.allclose(y_big, mlp_reference(x_big, params), atol=5e-2, rtol=5e-2)

    # 3) f32 MXU path (precision=HIGHEST); medium batch -> 2 grid steps so both
    #    v7x TensorCores are used (no-op split on v5e/v6e).
    key, kx = jax.random.split(key)
    x_f32 = jax.random.normal(kx, (64, input_dim), jnp.float32)
    y_f32 = jax.block_until_ready(
        mlp_forward(x_f32, params, compute_dtype=jnp.float32))
    assert y_f32.shape == (64, output_dim)
    assert jnp.allclose(y_f32, mlp_reference(x_f32, params), atol=1e-3, rtol=1e-3)

    print("KERNEL_OK")
</pallas_src>

<mosaic_0001>
module attributes {stable_mosaic.version = 11 : i64} {
  func.func @_mlp_kernel(%arg0: i32, %arg1: memref<8x32xf32, #tpu.memory_space<vmem>>, %arg2: memref<32x256xbf16, #tpu.memory_space<vmem>>, %arg3: memref<1x256xf32, #tpu.memory_space<vmem>>, %arg4: memref<256x256xbf16, #tpu.memory_space<vmem>>, %arg5: memref<1x256xf32, #tpu.memory_space<vmem>>, %arg6: memref<256x16xbf16, #tpu.memory_space<vmem>>, %arg7: memref<1x16xf32, #tpu.memory_space<vmem>>, %arg8: memref<8x16xf32, #tpu.memory_space<vmem>>) attributes {dimension_semantics = [#tpu.dimension_semantics<parallel>], iteration_bounds = array<i64: 1>, scalar_prefetch = 0 : i64, scratch_operands = 0 : i64, tpu.core_type = #tpu.core_type<tc>, window_params = [{transform_indices = @transform_0, window_bounds = array<i64: 8, 32>}, {pipeline_mode = #tpu.pipeline_mode<synchronous>, transform_indices = @transform_1, window_bounds = array<i64: 32, 256>}, {pipeline_mode = #tpu.pipeline_mode<synchronous>, transform_indices = @transform_2, window_bounds = array<i64: 1, 256>}, {pipeline_mode = #tpu.pipeline_mode<synchronous>, transform_indices = @transform_3, window_bounds = array<i64: 256, 256>}, {pipeline_mode = #tpu.pipeline_mode<synchronous>, transform_indices = @transform_4, window_bounds = array<i64: 1, 256>}, {pipeline_mode = #tpu.pipeline_mode<synchronous>, transform_indices = @transform_5, window_bounds = array<i64: 256, 16>}, {pipeline_mode = #tpu.pipeline_mode<synchronous>, transform_indices = @transform_6, window_bounds = array<i64: 1, 16>}, {transform_indices = @transform_7, window_bounds = array<i64: 8, 16>}]} {
    %c0 = arith.constant 0 : index
    %c0_0 = arith.constant 0 : index
    %0 = vector.load %arg1[%c0, %c0_0] : memref<8x32xf32, #tpu.memory_space<vmem>>, vector<8x32xf32>
    %1 = arith.truncf %0 : vector<8x32xf32> to vector<8x32xbf16>
    %c0_1 = arith.constant 0 : index
    %c0_2 = arith.constant 0 : index
    %2 = vector.load %arg2[%c0_1, %c0_2] : memref<32x256xbf16, #tpu.memory_space<vmem>>, vector<32x256xbf16>
    %cst = arith.constant dense<0.000000e+00> : vector<8x256xf32>
    %3 = tpu.matmul %1, %2, %cst {dimension_numbers = #tpu.dot_dimension_numbers<[1], [0], [0], [1], [0, 0, 1, 1], [], []>} : vector<8x32xbf16>, vector<32x256xbf16>, vector<8x256xf32> -> vector<8x256xf32>
    %c0_3 = arith.constant 0 : index
    %c0_4 = arith.constant 0 : index
    %4 = vector.load %arg3[%c0_3, %c0_4] : memref<1x256xf32, #tpu.memory_space<vmem>>, vector<1x256xf32>
    %5 = vector.broadcast %4 : vector<1x256xf32> to vector<8x256xf32>
    %6 = arith.addf %3, %5 : vector<8x256xf32>
    %cst_5 = arith.constant 0.000000e+00 : f32
    %7 = vector.broadcast %cst_5 : f32 to vector<8x256xf32>
    %8 = arith.maximumf %6, %7 : vector<8x256xf32>
    %9 = arith.truncf %8 : vector<8x256xf32> to vector<8x256xbf16>
    %c0_6 = arith.constant 0 : index
    %c0_7 = arith.constant 0 : index
    %10 = vector.load %arg4[%c0_6, %c0_7] : memref<256x256xbf16, #tpu.memory_space<vmem>>, vector<256x256xbf16>
    %cst_8 = arith.constant dense<0.000000e+00> : vector<8x256xf32>
    %11 = tpu.matmul %9, %10, %cst_8 {dimension_numbers = #tpu.dot_dimension_numbers<[1], [0], [0], [1], [0, 0, 1, 1], [], []>} : vector<8x256xbf16>, vector<256x256xbf16>, vector<8x256xf32> -> vector<8x256xf32>
    %c0_9 = arith.constant 0 : index
    %c0_10 = arith.constant 0 : index
    %12 = vector.load %arg5[%c0_9, %c0_10] : memref<1x256xf32, #tpu.memory_space<vmem>>, vector<1x256xf32>
    %13 = vector.broadcast %12 : vector<1x256xf32> to vector<8x256xf32>
    %14 = arith.addf %11, %13 : vector<8x256xf32>
    %cst_11 = arith.constant 0.000000e+00 : f32
    %15 = vector.broadcast %cst_11 : f32 to vector<8x256xf32>
    %16 = arith.maximumf %14, %15 : vector<8x256xf32>
    %17 = arith.truncf %16 : vector<8x256xf32> to vector<8x256xbf16>
    %c0_12 = arith.constant 0 : index
    %c0_13 = arith.constant 0 : index
    %18 = vector.load %arg6[%c0_12, %c0_13] : memref<256x16xbf16, #tpu.memory_space<vmem>>, vector<256x16xbf16>
    %cst_14 = arith.constant dense<0.000000e+00> : vector<8x16xf32>
    %19 = tpu.matmul %17, %18, %cst_14 {dimension_numbers = #tpu.dot_dimension_numbers<[1], [0], [0], [1], [0, 0, 1, 1], [], []>} : vector<8x256xbf16>, vector<256x16xbf16>, vector<8x16xf32> -> vector<8x16xf32>
    %c0_15 = arith.constant 0 : index
    %c0_16 = arith.constant 0 : index
    %20 = vector.load %arg7[%c0_15, %c0_16] : memref<1x16xf32, #tpu.memory_space<vmem>>, vector<1x16xf32>
    %21 = vector.broadcast %20 : vector<1x16xf32> to vector<8x16xf32>
    %22 = arith.addf %19, %21 : vector<8x16xf32>
    %c0_17 = arith.constant 0 : index
    %c0_18 = arith.constant 0 : index
    %23 = vector.load %arg8[%c0_17, %c0_18] : memref<8x16xf32, #tpu.memory_space<vmem>>, vector<8x16xf32>
    tpu.vector_store %arg8[%c0_17, %c0_18], %22 {strides = array<i32>} : memref<8x16xf32, #tpu.memory_space<vmem>>, vector<8x16xf32>,
    return
  }
  func.func @transform_0(%arg0: i32) -> (i32, i32) {
    %c0_i32 = arith.constant 0 : i32
    %c0_i32_0 = arith.constant 0 : i32
    return %arg0, %c0_i32 : i32, i32
  }
  func.func @transform_1(%arg0: i32) -> (i32, i32) {
    %c0_i32 = arith.constant 0 : i32
    %c0_i32_0 = arith.constant 0 : i32
    %c0_i32_1 = arith.constant 0 : i32
    return %c0_i32, %c0_i32_0 : i32, i32
  }
  func.func @transform_2(%arg0: i32) -> (i32, i32) {
    %c0_i32 = arith.constant 0 : i32
    %c0_i32_0 = arith.constant 0 : i32
    %c0_i32_1 = arith.constant 0 : i32
    return %c0_i32, %c0_i32_0 : i32, i32
  }
  func.func @transform_3(%arg0: i32) -> (i32, i32) {
    %c0_i32 = arith.constant 0 : i32
    %c0_i32_0 = arith.constant 0 : i32
    %c0_i32_1 = arith.constant 0 : i32
    return %c0_i32, %c0_i32_0 : i32, i32
  }
  func.func @transform_4(%arg0: i32) -> (i32, i32) {
    %c0_i32 = arith.constant 0 : i32
    %c0_i32_0 = arith.constant 0 : i32
    %c0_i32_1 = arith.constant 0 : i32
    return %c0_i32, %c0_i32_0 : i32, i32
  }
  func.func @transform_5(%arg0: i32) -> (i32, i32) {
    %c0_i32 = arith.constant 0 : i32
    %c0_i32_0 = arith.constant 0 : i32
    %c0_i32_1 = arith.constant 0 : i32
    return %c0_i32, %c0_i32_0 : i32, i32
  }
  func.func @transform_6(%arg0: i32) -> (i32, i32) {
    %c0_i32 = arith.constant 0 : i32
    %c0_i32_0 = arith.constant 0 : i32
    %c0_i32_1 = arith.constant 0 : i32
    return %c0_i32, %c0_i32_0 : i32, i32
  }
  func.func @transform_7(%arg0: i32) -> (i32, i32) {
    %c0_i32 = arith.constant 0 : i32
    %c0_i32_0 = arith.constant 0 : i32
    return %arg0, %c0_i32 : i32, i32
  }
}

</mosaic_0001>

<llo_original>
// kernel: mlp_forward.1
$region0: #{mlp_forward.1}
  #allocation0 [shape = 'u32[]', space=smem, size = 0x4, offset = 0x4, fixed_abs, tag = 'smem constant byte address 0x4 - core index']
  #allocation1 [shape = 'u32[144,128]{1,0:T(1,128)}', space=vmem, size = 0x12000, scoped, tag = 'internal scratch']
  %s0 = inlined_call_operand.vmem [shape: f32[8,32], index: 0, kind: input, shape index: {}]
  %s1 = inlined_call_operand.vmem [shape: bf16[32,256], index: 1, kind: input, shape index: {}]
  %s2 = inlined_call_operand.vmem [shape: f32[1,256], index: 2, kind: input, shape index: {}]
  %s3 = inlined_call_operand.vmem [shape: bf16[256,256], index: 3, kind: input, shape index: {}]
  %s4 = inlined_call_operand.vmem [shape: f32[1,256], index: 4, kind: input, shape index: {}]
  %s5 = inlined_call_operand.vmem [shape: bf16[256,16], index: 5, kind: input, shape index: {}]
  %s6 = inlined_call_operand.vmem [shape: f32[1,16], index: 6, kind: input, shape index: {}]
  %s7 = inlined_call_operand.hbm [shape: f32[8,16], index: 7, kind: output, shape index: {}]
  %s8 = sld [smem:[#allocation0]]
  $region38: #{mlp_forward.1} parent=0
    _
  %s10 = ssub.s32 1, %s8
  %s11 = scalar_select 0, %s10, %s8
  $region1: #{mlp_forward.1} parent=0
    #allocation2 [shape = 'u8[4096]{0}', space=vmem, size = 0x1000, scoped, tag = 'output window, operand 0, single buffered']
    #allocation3 [shape = 's32[1]{0}', space=sflag, size = 0x4, scoped, tag = 'scoped memory for mlp_forward.1']
    %12 = vsyncpa [#allocation3], 0
    // Predicated region
    $region2: #{mlp_forward.1} parent=1 // pred_check
      _
    $region3: #{mlp_forward.1} parent=1 // pred_check_branch
      %14 = sbr.rel (0) target = $region5
    $region4: #{mlp_forward.1} parent=1 // pred_region
      _
    $region5: #{mlp_forward.1} parent=1 // pred_fallthru
      _
    // Predicated region
    $region6: #{mlp_forward.1} parent=1 // pred_check
      _
    $region7: #{mlp_forward.1} parent=1 // pred_check_branch
      %16 = sbr.rel (0) target = $region9
    $region8: #{mlp_forward.1} parent=1 // pred_region
      _
    $region9: #{mlp_forward.1} parent=1 // pred_fallthru
      _
    // Predicated region
    $region10: #{mlp_forward.1} parent=1 // pred_check
      _
    $region11: #{mlp_forward.1} parent=1 // pred_check_branch
      %18 = sbr.rel (0) target = $region13
    $region12: #{mlp_forward.1} parent=1 // pred_region
      _
    $region13: #{mlp_forward.1} parent=1 // pred_fallthru
      _
    // Predicated region
    $region14: #{mlp_forward.1} parent=1 // pred_check
      _
    $region15: #{mlp_forward.1} parent=1 // pred_check_branch
      %20 = sbr.rel (0) target = $region17
    $region16: #{mlp_forward.1} parent=1 // pred_region
      _
    $region17: #{mlp_forward.1} parent=1 // pred_fallthru
      _
    // Predicated region
    $region18: #{mlp_forward.1} parent=1 // pred_check
      _
    $region19: #{mlp_forward.1} parent=1 // pred_check_branch
      %22 = sbr.rel (0) target = $region21
    $region20: #{mlp_forward.1} parent=1 // pred_region
      _
    $region21: #{mlp_forward.1} parent=1 // pred_fallthru
      _
    // Predicated region
    $region22: #{mlp_forward.1} parent=1 // pred_check
      _
    $region23: #{mlp_forward.1} parent=1 // pred_check_branch
      %24 = sbr.rel (0) target = $region25
    $region24: #{mlp_forward.1} parent=1 // pred_region
      _
    $region25: #{mlp_forward.1} parent=1 // pred_fallthru
      _
    // Predicated region
    $region26: #{mlp_forward.1} parent=1 // pred_check
      _
    $region27: #{mlp_forward.1} parent=1 // pred_check_branch
      %26 = sbr.rel (0) target = $region29
    $region28: #{mlp_forward.1} parent=1 // pred_region
      _
    $region29: #{mlp_forward.1} parent=1 // pred_fallthru
      _
    %v28 = vld [vmem:[%s0] sm:$0xff]
    %v29 = vpack.c.bf16 %v28, %v28
    %v30 = vld [vmem:[%s1] sm:$0xff]
    %v31 = vld [vmem:[%s1 + $0x8] sm:$0xff]
    %v32 = vld [vmem:[%s1 + $0x10] sm:$0xff]
    %v33 = vld [vmem:[%s1 + $0x18] sm:$0xff]
    %v34 = vld [vmem:[%s2] sm:$0x3]
    %v36 = vlaneseq
    %v37 = vshrl.u32 %v36, 7
    %v38 = vsub.s32 0, %v37
    %v39 = vrot.slane %v34, %v38
    %v40 = vlaneseq
    %v41 = vshrl.u32 %v40, 7
    %v42 = vsub.s32 1, %v41
    %v43 = vrot.slane %v34, %v42
    %v50 = vunpack.c.l.b16 %v30
    %v51 = vunpack.c.h.b16 %v30
    %v52 = vunpack.c.l.b16 %v31
    %v53 = vunpack.c.h.b16 %v31
    %v54 = vunpack.c.l.b16 %v32
    %v55 = vunpack.c.h.b16 %v32
    %v56 = vunpack.c.l.b16 %v33
    %v57 = vunpack.c.h.b16 %v33
    %v58 = vpack.c.b16 %v52, %v50
    %v59 = vpack.c.b16 %v53, %v51
    %v60 = vpack.c.b16 %v56, %v54
    %v61 = vpack.c.b16 %v57, %v55
    %vm66 = vcmask 261120
    %v68 = vsel %vm66, %v29, 0
    %70 = vmatprep.subr.bf16.mxu0 0
    %71 = vmatpush1.bf16.msra.mxu0 0
    %72 = vmatprep.subr.bf16.mxu0 0
    %73 = vmatpush1.bf16.msra.mxu0 0
    %74 = vmatprep.subr.bf16.mxu0 0
    %75 = vmatpush1.bf16.msra.mxu0 0
    %76 = vmatprep.subr.bf16.mxu0 0
    %77 = vmatpush1.bf16.msra.mxu0 0
    %78 = vmatprep.subr.bf16.mxu0 0
    %79 = vmatpush1.bf16.msra.mxu0 0
    %80 = vmatprep.subr.bf16.mxu0 0
    %81 = vmatpush1.bf16.msra.mxu0 0
    %82 = vmatprep.subr.bf16.mxu0 %v61
    %83 = vmatpush1.bf16.msra.mxu0 %v60
    %84 = vmatprep.subr.bf16.mxu0 %v59
    %85 = vmatpush1.bf16.msra.mxu0 %v58
    %86 = vmatprep.subr.bf16.mxu0 0
    %87 = vmatpush2.bf16.msra.mxu0 0
    %88 = vmatprep.subr.bf16.mxu0 0
    %89 = vmatpush2.bf16.msra.mxu0 0
    %90 = vmatprep.subr.bf16.mxu0 0
    %91 = vmatpush2.bf16.msra.mxu0 0
    %92 = vmatprep.subr.bf16.mxu0 0
    %93 = vmatpush2.bf16.msra.mxu0 0
    %94 = vmatprep.subr.bf16.mxu0 0
    %95 = vmatpush2.bf16.msra.mxu0 0
    %96 = vmatprep.subr.bf16.mxu0 0
    %97 = vmatpush2.bf16.msra.mxu0 0
    %98 = vmatprep.subr.bf16.mxu0 0
    %99 = vmatpush2.bf16.msra.mxu0 0
    %100 = vmatprep.subr.bf16.mxu0 0
    %101 = vmatpush2.bf16.msra.mxu0 0
    %102 = vmatprep.mubr.bf16.mxu0 0
    %103 = vmatmul.mubr.bf16.gmra.mxu0 %v68
    %v104 = vpop.f32.mrf.mxu0
    %v105 = vadd.f32 %v39, %v104
    %v106 = vpop.f32.mrf.mxu0
    %v107 = vadd.f32 %v43, %v106
    %v108 = vpop.f32.mrf.mxu0
    %v109 = vpop.f32.mrf.mxu0
    %110 = vdwg.mxu0
    %v111 = vmax.f32 %v105, 0.0
    %v112 = vmax.f32 %v107, 0.0
    %v113 = vpack.c.bf16 %v111, %v111
    %v114 = vpack.c.bf16 %v112, %v112
    %v115 = vld [vmem:[%s3] sm:$0xff]
    %v116 = vld [vmem:[%s3 + $0x8] sm:$0xff]
    %v117 = vld [vmem:[%s3 + $0x10] sm:$0xff]
    %v118 = vld [vmem:[%s3 + $0x18] sm:$0xff]
    %v119 = vld [vmem:[%s3 + $0x20] sm:$0xff]
    %v120 = vld [vmem:[%s3 + $0x28] sm:$0xff]
    %v121 = vld [vmem:[%s3 + $0x30] sm:$0xff]
    %v122 = vld [vmem:[%s3 + $0x38] sm:$0xff]
    %v123 = vld [vmem:[%s3 + $0x40] sm:$0xff]
    %v124 = vld [vmem:[%s3 + $0x48] sm:$0xff]
    %v125 = vld [vmem:[%s3 + $0x50] sm:$0xff]
    %v126 = vld [vmem:[%s3 + $0x58] sm:$0xff]
    %v127 = vld [vmem:[%s3 + $0x60] sm:$0xff]
    %v128 = vld [vmem:[%s3 + $0x68] sm:$0xff]
    %v129 = vld [vmem:[%s3 + $0x70] sm:$0xff]
    %v130 = vld [vmem:[%s3 + $0x78] sm:$0xff]
    %v131 = vld [vmem:[%s3 + $0x80] sm:$0xff]
    %v132 = vld [vmem:[%s3 + $0x88] sm:$0xff]
    %v133 = vld [vmem:[%s3 + $0x90] sm:$0xff]
    %v134 = vld [vmem:[%s3 + $0x98] sm:$0xff]
    %v135 = vld [vmem:[%s3 + $0xa0] sm:$0xff]
    %v136 = vld [vmem:[%s3 + $0xa8] sm:$0xff]
    %v137 = vld [vmem:[%s3 + $0xb0] sm:$0xff]
    %v138 = vld [vmem:[%s3 + $0xb8] sm:$0xff]
    %v139 = vld [vmem:[%s3 + $0xc0] sm:$0xff]
    %v140 = vld [vmem:[%s3 + $0xc8] sm:$0xff]
    %v141 = vld [vmem:[%s3 + $0xd0] sm:$0xff]
    %v142 = vld [vmem:[%s3 + $0xd8] sm:$0xff]
    %v143 = vld [vmem:[%s3 + $0xe0] sm:$0xff]
    %v144 = vld [vmem:[%s3 + $0xe8] sm:$0xff]
    %v145 = vld [vmem:[%s3 + $0xf0] sm:$0xff]
    %v146 = vld [vmem:[%s3 + $0xf8] sm:$0xff]
    %v147 = vld [vmem:[%s4] sm:$0x3]
    %v149 = vlaneseq
    %v150 = vshrl.u32 %v149, 7
    %v151 = vsub.s32 0, %v150
    %v152 = vrot.slane %v147, %v151
    %v153 = vlaneseq
    %v154 = vshrl.u32 %v153, 7
    %v155 = vsub.s32 1, %v154
    %v156 = vrot.slane %v147, %v155
    %v191 = vunpack.c.l.b16 %v115
    %v192 = vunpack.c.h.b16 %v115
    %v193 = vunpack.c.l.b16 %v116
    %v194 = vunpack.c.h.b16 %v116
    %v195 = vunpack.c.l.b16 %v117
    %v196 = vunpack.c.h.b16 %v117
    %v197 = vunpack.c.l.b16 %v118
    %v198 = vunpack.c.h.b16 %v118
    %v199 = vunpack.c.l.b16 %v119
    %v200 = vunpack.c.h.b16 %v119
    %v201 = vunpack.c.l.b16 %v120
    %v202 = vunpack.c.h.b16 %v120
    %v203 = vunpack.c.l.b16 %v121
    %v204 = vunpack.c.h.b16 %v121
    %v205 = vunpack.c.l.b16 %v122
    %v206 = vunpack.c.h.b16 %v122
    %v207 = vunpack.c.l.b16 %v123
    %v208 = vunpack.c.h.b16 %v123
    %v209 = vunpack.c.l.b16 %v124
    %v210 = vunpack.c.h.b16 %v124
    %v211 = vunpack.c.l.b16 %v125
    %v212 = vunpack.c.h.b16 %v125
    %v213 = vunpack.c.l.b16 %v126
    %v214 = vunpack.c.h.b16 %v126
    %v215 = vunpack.c.l.b16 %v127
    %v216 = vunpack.c.h.b16 %v127
    %v217 = vunpack.c.l.b16 %v128
    %v218 = vunpack.c.h.b16 %v128
    %v219 = vunpack.c.l.b16 %v129
    %v220 = vunpack.c.h.b16 %v129
    %v221 = vunpack.c.l.b16 %v130
    %v222 = vunpack.c.h.b16 %v130
    %v223 = vunpack.c.l.b16 %v131
    %v224 = vunpack.c.h.b16 %v131
    %v225 = vunpack.c.l.b16 %v132
    %v226 = vunpack.c.h.b16 %v132
    %v227 = vunpack.c.l.b16 %v133
    %v228 = vunpack.c.h.b16 %v133
    %v229 = vunpack.c.l.b16 %v134
    %v230 = vunpack.c.h.b16 %v134
    %v231 = vunpack.c.l.b16 %v135
    %v232 = vunpack.c.h.b16 %v135
    %v233 = vunpack.c.l.b16 %v136
    %v234 = vunpack.c.h.b16 %v136
    %v235 = vunpack.c.l.b16 %v137
    %v236 = vunpack.c.h.b16 %v137
    %v237 = vunpack.c.l.b16 %v138
    %v238 = vunpack.c.h.b16 %v138
    %v239 = vunpack.c.l.b16 %v139
    %v240 = vunpack.c.h.b16 %v139
    %v241 = vunpack.c.l.b16 %v140
    %v242 = vunpack.c.h.b16 %v140
    %v243 = vunpack.c.l.b16 %v141
    %v244 = vunpack.c.h.b16 %v141
    %v245 = vunpack.c.l.b16 %v142
    %v246 = vunpack.c.h.b16 %v142
    %v247 = vunpack.c.l.b16 %v143
    %v248 = vunpack.c.h.b16 %v143
    %v249 = vunpack.c.l.b16 %v144
    %v250 = vunpack.c.h.b16 %v144
    %v251 = vunpack.c.l.b16 %v145
    %v252 = vunpack.c.h.b16 %v145
    %v253 = vunpack.c.l.b16 %v146
    %v254 = vunpack.c.h.b16 %v146
    %v255 = vpack.c.b16 %v193, %v191
    %v256 = vpack.c.b16 %v194, %v192
    %v257 = vpack.c.b16 %v197, %v195
    %v258 = vpack.c.b16 %v198, %v196
    %v259 = vpack.c.b16 %v201, %v199
    %v260 = vpack.c.b16 %v202, %v200
    %v261 = vpack.c.b16 %v205, %v203
    %v262 = vpack.c.b16 %v206, %v204
    %v263 = vpack.c.b16 %v209, %v207
    %v264 = vpack.c.b16 %v210, %v208
    %v265 = vpack.c.b16 %v213, %v211
    %v266 = vpack.c.b16 %v214, %v212
    %v267 = vpack.c.b16 %v217, %v215
    %v268 = vpack.c.b16 %v218, %v216
    %v269 = vpack.c.b16 %v221, %v219
    %v270 = vpack.c.b16 %v222, %v220
    %v271 = vpack.c.b16 %v225, %v223
    %v272 = vpack.c.b16 %v226, %v224
    %v273 = vpack.c.b16 %v229, %v227
    %v274 = vpack.c.b16 %v230, %v228
    %v275 = vpack.c.b16 %v233, %v231
    %v276 = vpack.c.b16 %v234, %v232
    %v277 = vpack.c.b16 %v237, %v235
    %v278 = vpack.c.b16 %v238, %v236
    %v279 = vpack.c.b16 %v241, %v239
    %v280 = vpack.c.b16 %v242, %v240
    %v281 = vpack.c.b16 %v245, %v243
    %v282 = vpack.c.b16 %v246, %v244
    %v283 = vpack.c.b16 %v249, %v247
    %v284 = vpack.c.b16 %v250, %v248
    %v285 = vpack.c.b16 %v253, %v251
    %v286 = vpack.c.b16 %v254, %v252
    %319 = vmatprep.subr.bf16.mxu0 %v270
    %320 = vmatpush1.bf16.msra.mxu0 %v269
    %321 = vmatprep.subr.bf16.mxu0 %v268
    %322 = vmatpush1.bf16.msra.mxu0 %v267
    %323 = vmatprep.subr.bf16.mxu0 %v266
    %324 = vmatpush1.bf16.msra.mxu0 %v265
    %325 = vmatprep.subr.bf16.mxu0 %v264
    %326 = vmatpush1.bf16.msra.mxu0 %v263
    %327 = vmatprep.subr.bf16.mxu0 %v262
    %328 = vmatpush1.bf16.msra.mxu0 %v261
    %329 = vmatprep.subr.bf16.mxu0 %v260
    %330 = vmatpush1.bf16.msra.mxu0 %v259
    %331 = vmatprep.subr.bf16.mxu0 %v258
    %332 = vmatpush1.bf16.msra.mxu0 %v257
    %333 = vmatprep.subr.bf16.mxu0 %v256
    %334 = vmatpush1.bf16.msra.mxu0 %v255
    %335 = vmatprep.subr.bf16.mxu0 %v286
    %336 = vmatpush2.bf16.msra.mxu0 %v285
    %337 = vmatprep.subr.bf16.mxu0 %v284
    %338 = vmatpush2.bf16.msra.mxu0 %v283
    %339 = vmatprep.subr.bf16.mxu0 %v282
    %340 = vmatpush2.bf16.msra.mxu0 %v281
    %341 = vmatprep.subr.bf16.mxu0 %v280
    %342 = vmatpush2.bf16.msra.mxu0 %v279
    %343 = vmatprep.subr.bf16.mxu0 %v278
    %344 = vmatpush2.bf16.msra.mxu0 %v277
    %345 = vmatprep.subr.bf16.mxu0 %v276
    %346 = vmatpush2.bf16.msra.mxu0 %v275
    %347 = vmatprep.subr.bf16.mxu0 %v274
    %348 = vmatpush2.bf16.msra.mxu0 %v273
    %349 = vmatprep.subr.bf16.mxu0 %v272
    %350 = vmatpush2.bf16.msra.mxu0 %v271
    %351 = vmatprep.mubr.bf16.mxu0 %v114
    %352 = vmatmul.mubr.bf16.gmra.mxu0 %v113
    %v353 = vpop.f32.mrf.mxu0
    %v354 = vadd.f32 %v152, %v353
    %v355 = vpop.f32.mrf.mxu0
    %v356 = vadd.f32 %v156, %v355
    %v357 = vpop.f32.mrf.mxu0
    %v358 = vpop.f32.mrf.mxu0
    %359 = vdwg.mxu0
    %v360 = vmax.f32 %v354, 0.0
    %v361 = vmax.f32 %v356, 0.0
    %v362 = vpack.c.bf16 %v360, %v360
    %v363 = vpack.c.bf16 %v361, %v361
    %v364 = vld [vmem:[%s5] sm:$0xf]
    %v365 = vld [vmem:[%s5 + $0x4] sm:$0xf]
    %v366 = vld [vmem:[%s5 + $0x8] sm:$0xf]
    %v367 = vld [vmem:[%s5 + $0xc] sm:$0xf]
    %v368 = vld [vmem:[%s5 + $0x10] sm:$0xf]
    %v369 = vld [vmem:[%s5 + $0x14] sm:$0xf]
    %v370 = vld [vmem:[%s5 + $0x18] sm:$0xf]
    %v371 = vld [vmem:[%s5 + $0x1c] sm:$0xf]
    %v372 = vld [vmem:[%s5 + $0x20] sm:$0xf]
    %v373 = vld [vmem:[%s5 + $0x24] sm:$0xf]
    %v374 = vld [vmem:[%s5 + $0x28] sm:$0xf]
    %v375 = vld [vmem:[%s5 + $0x2c] sm:$0xf]
    %v376 = vld [vmem:[%s5 + $0x30] sm:$0xf]
    %v377 = vld [vmem:[%s5 + $0x34] sm:$0xf]
    %v378 = vld [vmem:[%s5 + $0x38] sm:$0xf]
    %v379 = vld [vmem:[%s5 + $0x3c] sm:$0xf]
    %v380 = vld [vmem:[%s5 + $0x40] sm:$0xf]
    %v381 = vld [vmem:[%s5 + $0x44] sm:$0xf]
    %v382 = vld [vmem:[%s5 + $0x48] sm:$0xf]
    %v383 = vld [vmem:[%s5 + $0x4c] sm:$0xf]
    %v384 = vld [vmem:[%s5 + $0x50] sm:$0xf]
    %v385 = vld [vmem:[%s5 + $0x54] sm:$0xf]
    %v386 = vld [vmem:[%s5 + $0x58] sm:$0xf]
    %v387 = vld [vmem:[%s5 + $0x5c] sm:$0xf]
    %v388 = vld [vmem:[%s5 + $0x60] sm:$0xf]
    %v389 = vld [vmem:[%s5 + $0x64] sm:$0xf]
    %v390 = vld [vmem:[%s5 + $0x68] sm:$0xf]
    %v391 = vld [vmem:[%s5 + $0x6c] sm:$0xf]
    %v392 = vld [vmem:[%s5 + $0x70] sm:$0xf]
    %v393 = vld [vmem:[%s5 + $0x74] sm:$0xf]
    %v394 = vld [vmem:[%s5 + $0x78] sm:$0xf]
    %v395 = vld [vmem:[%s5 + $0x7c] sm:$0xf]
    %v396 = vld [vmem:[%s6] sm:$0x1]
    %v398 = vlaneseq
    %v399 = vshrl.u32 %v398, 7
    %v400 = vsub.s32 0, %v399
    %v401 = vrot.slane %v396, %v400
    %v435 = vunpack.c.l.b16 %v364
    %v436 = vunpack.c.l.b16 %v365
    %v437 = vunpack.c.l.b16 %v366
    %v438 = vunpack.c.l.b16 %v367
    %v439 = vunpack.c.l.b16 %v368
    %v440 = vunpack.c.l.b16 %v369
    %v441 = vunpack.c.l.b16 %v370
    %v442 = vunpack.c.l.b16 %v371
    %v443 = vunpack.c.l.b16 %v372
    %v444 = vunpack.c.l.b16 %v373
    %v445 = vunpack.c.l.b16 %v374
    %v446 = vunpack.c.l.b16 %v375
    %v447 = vunpack.c.l.b16 %v376
    %v448 = vunpack.c.l.b16 %v377
    %v449 = vunpack.c.l.b16 %v378
    %v450 = vunpack.c.l.b16 %v379
    %v451 = vunpack.c.l.b16 %v380
    %v452 = vunpack.c.l.b16 %v381
    %v453 = vunpack.c.l.b16 %v382
    %v454 = vunpack.c.l.b16 %v383
    %v455 = vunpack.c.l.b16 %v384
    %v456 = vunpack.c.l.b16 %v385
    %v457 = vunpack.c.l.b16 %v386
    %v458 = vunpack.c.l.b16 %v387
    %v459 = vunpack.c.l.b16 %v388
    %v460 = vunpack.c.l.b16 %v389
    %v461 = vunpack.c.l.b16 %v390
    %v462 = vunpack.c.l.b16 %v391
    %v463 = vunpack.c.l.b16 %v392
    %v464 = vunpack.c.l.b16 %v393
    %v465 = vunpack.c.l.b16 %v394
    %v466 = vunpack.c.l.b16 %v395
    %v467 = vpack.c.b16 %v436, %v435
    %v468 = vpack.c.b16 %v438, %v437
    %v469 = vpack.c.b16 %v440, %v439
    %v470 = vpack.c.b16 %v442, %v441
    %v471 = vpack.c.b16 %v444, %v443
    %v472 = vpack.c.b16 %v446, %v445
    %v473 = vpack.c.b16 %v448, %v447
    %v474 = vpack.c.b16 %v450, %v449
    %v475 = vpack.c.b16 %v452, %v451
    %v476 = vpack.c.b16 %v454, %v453
    %v477 = vpack.c.b16 %v456, %v455
    %v478 = vpack.c.b16 %v458, %v457
    %v479 = vpack.c.b16 %v460, %v459
    %v480 = vpack.c.b16 %v462, %v461
    %v481 = vpack.c.b16 %v464, %v463
    %v482 = vpack.c.b16 %v466, %v465
    %499 = vmatprep.subr.bf16.mxu0 0
    %500 = vmatpush1.bf16.msra.mxu0 %v474
    %501 = vmatprep.subr.bf16.mxu0 0
    %502 = vmatpush1.bf16.msra.mxu0 %v473
    %503 = vmatprep.subr.bf16.mxu0 0
    %504 = vmatpush1.bf16.msra.mxu0 %v472
    %505 = vmatprep.subr.bf16.mxu0 0
    %506 = vmatpush1.bf16.msra.mxu0 %v471
    %507 = vmatprep.subr.bf16.mxu0 0
    %508 = vmatpush1.bf16.msra.mxu0 %v470
    %509 = vmatprep.subr.bf16.mxu0 0
    %510 = vmatpush1.bf16.msra.mxu0 %v469
    %511 = vmatprep.subr.bf16.mxu0 0
    %512 = vmatpush1.bf16.msra.mxu0 %v468
    %513 = vmatprep.subr.bf16.mxu0 0
    %514 = vmatpush1.bf16.msra.mxu0 %v467
    %515 = vmatprep.subr.bf16.mxu0 0
    %516 = vmatpush2.bf16.msra.mxu0 %v482
    %517 = vmatprep.subr.bf16.mxu0 0
    %518 = vmatpush2.bf16.msra.mxu0 %v481
    %519 = vmatprep.subr.bf16.mxu0 0
    %520 = vmatpush2.bf16.msra.mxu0 %v480
    %521 = vmatprep.subr.bf16.mxu0 0
    %522 = vmatpush2.bf16.msra.mxu0 %v479
    %523 = vmatprep.subr.bf16.mxu0 0
    %524 = vmatpush2.bf16.msra.mxu0 %v478
    %525 = vmatprep.subr.bf16.mxu0 0
    %526 = vmatpush2.bf16.msra.mxu0 %v477
    %527 = vmatprep.subr.bf16.mxu0 0
    %528 = vmatpush2.bf16.msra.mxu0 %v476
    %529 = vmatprep.subr.bf16.mxu0 0
    %530 = vmatpush2.bf16.msra.mxu0 %v475
    %531 = vmatprep.mubr.bf16.mxu0 %v363
    %532 = vmatmul.mubr.bf16.gmra.mxu0 %v362
    %v533 = vpop.f32.mrf.mxu0
    %v534 = vadd.f32 %v401, %v533
    %v535 = vpop.f32.mrf.mxu0
    %v536 = vpop.f32.mrf.mxu0
    %v537 = vpop.f32.mrf.mxu0
    %538 = vdwg.mxu0
    %vm539 = vcmask 130048
    %540 = vst.msk [vmem:[#allocation2] sm:$0xff] %vm539, %v534
    // Predicated region
    $region30: #{mlp_forward.1} parent=1 // pred_check
      _
    $region31: #{mlp_forward.1} parent=1 // pred_check_branch
      %542 = sbr.rel (0) target = $region33
    $region32: #{mlp_forward.1} parent=1 // pred_region
      %s544 = ssub.s32 128, 128
      %545 = vsyncadd [#allocation3], %s544
      %s547 = sshll.u32 [#allocation2], 4
      %s548 = int_to_ptr.vmem [resolvable:$true] %s547
      %550 = dma.vmem_to_hbm [thread:$0]  %s548, 128, %s7, [#allocation3]
    $region33: #{mlp_forward.1} parent=1 // pred_fallthru
      _
    // Predicated region
    $region34: #{mlp_forward.1} parent=1 // pred_check
      _
    $region35: #{mlp_forward.1} parent=1 // pred_check_branch
      %552 = sbr.rel (0) target = $region37
    $region36: #{mlp_forward.1} parent=1 // pred_region
      %553 = dma.done [#allocation3], 128
    $region37: #{mlp_forward.1} parent=1 // pred_fallthru
      _
    %554 = vsyncpa [#allocation3], 1

</llo_original>
